<compile_context>
chip_gen: v7x
topology: tpu7x:2x2x1
jax: 0.10.0
libtpu: 0.0.40
codegen_flags: <defaults>
</compile_context>

<pallas_src>
import jax
import jax.numpy as jnp
from jax.experimental import pallas as pl
from jax.experimental.pallas import tpu as pltpu

KH, KW = 3, 3     # RepVGGBlock asserts kernel_size == 3
LANES = 128       # TPU lane width; Cout tile size


def _repvgg_kernel(x_ref, w_ref, b_ref, o_ref):
    """Fused 3x3 conv + bias + SiLU for one (batch, H-block, Cout-block) tile.

    x_ref: (1, Hp, Wp, Cin)     padded NHWC input (bf16); whole image, resident
                                across the H / Cout grid axes
    w_ref: (KH, KW*Cin, TCo)    re-parameterized weights, KW folded into K (bf16)
    b_ref: (1, TCo)             re-parameterized bias (f32)
    o_ref: (1, TH, W, TCo)      output tile (lane-dense: TCo == 128)
    """
    _, TH, W, TCo = o_ref.shape
    Cin = x_ref.shape[3]

    h0 = pl.multiple_of(pl.program_id(1) * TH, TH)
    rows = x_ref[0, pl.ds(h0, TH + KH - 1), :, :]            # (TH+2, Wp, Cin) bf16

    # KW-fold (im2col along W only): xcat[r, w, kw*Cin + c] = rows[r, w + kw, c]
    xcat = jnp.concatenate([rows[:, kw:kw + W, :] for kw in range(KW)], axis=2)

    acc = jnp.zeros((TH * W, TCo), jnp.float32)
    for kh in range(KH):                                     # static unroll, 3 taps
        patch = xcat[kh:kh + TH].reshape(TH * W, KW * Cin)   # bf16
        acc += jnp.dot(patch, w_ref[kh], preferred_element_type=jnp.float32)

    y = acc + b_ref[...]                                     # bias add (f32)
    y = y * (1.0 / (1.0 + jnp.exp(-y)))                      # SiLU
    o_ref[...] = y.reshape(1, TH, W, TCo).astype(o_ref.dtype)


@jax.jit
def repvgg_fused_forward(x_nchw, weight, bias):
    """RepVGGBlock forward with re-parameterized weights.

    x_nchw: (B, Cin, H, W) f32; weight: (Cout, Cin, 3, 3) f32; bias: (Cout,) f32.
    """
    B, Cin, H, W = x_nchw.shape
    Cout = weight.shape[0]
    Cout_p = ((Cout + LANES - 1) // LANES) * LANES
    TCo = LANES
    TH = 8 if H % 8 == 0 else H
    Hp, Wp = H + 2, W + 2

    # glue (plain JAX): layout change, halo zero-pad, bf16 cast, weight rearrange
    x_nhwc = jnp.transpose(x_nchw, (0, 2, 3, 1)).astype(jnp.bfloat16)
    x_pad = jnp.pad(x_nhwc, ((0, 0), (1, 1), (1, 1), (0, 0)))

    w_p = jnp.pad(weight, ((0, Cout_p - Cout), (0, 0), (0, 0), (0, 0)))
    # (Cout_p, Cin, KH, KW) -> (KH, KW*Cin, Cout_p): matches the in-kernel KW fold
    w_taps = jnp.transpose(w_p, (2, 3, 1, 0)).reshape(KH, KW * Cin, Cout_p)
    w_taps = w_taps.astype(jnp.bfloat16)
    b_p = jnp.pad(bias, (0, Cout_p - Cout)).reshape(1, Cout_p).astype(jnp.float32)

    grid = (B, H // TH, Cout_p // TCo)

    out = pl.pallas_call(
        _repvgg_kernel,
        out_shape=jax.ShapeDtypeStruct((B, H, W, Cout_p), x_nchw.dtype),
        grid_spec=pltpu.PrefetchScalarGridSpec(
            num_scalar_prefetch=0,
            grid=grid,
            in_specs=[
                pl.BlockSpec((1, Hp, Wp, Cin), lambda b, h, c: (b, 0, 0, 0)),
                pl.BlockSpec((KH, KW * Cin, TCo), lambda b, h, c: (0, 0, c)),
                pl.BlockSpec((1, TCo), lambda b, h, c: (0, c)),
            ],
            out_specs=pl.BlockSpec((1, TH, W, TCo), lambda b, h, c: (b, h, 0, c)),
        ),
        compiler_params=pltpu.CompilerParams(
            dimension_semantics=("parallel", "parallel", "parallel")),
    )(x_pad, w_taps, b_p)

    return jnp.transpose(out[..., :Cout], (0, 3, 1, 2))      # back to NCHW


def fuse_repvgg_params(p, eps=1e-5):
    """Fold 3x3 conv-BN + 1x1 conv-BN + (optional) identity-BN into one 3x3
    kernel + bias, mirroring RepVGGBlock.get_equivalent_kernel_bias (eval mode)."""
    cout, cin = p["w3"].shape[:2]

    t3 = p["g3"] / jnp.sqrt(p["v3"] + eps)
    k = p["w3"] * t3[:, None, None, None]
    b = p["b3"] - p["m3"] * t3

    t1 = p["g1"] / jnp.sqrt(p["v1"] + eps)
    k = k + jnp.pad(p["w1"] * t1[:, None, None, None],
                    ((0, 0), (0, 0), (1, 1), (1, 1)))
    b = b + p["b1"] - p["m1"] * t1

    if "gid" in p:   # identity branch exists only when cin == cout (groups=1)
        tid = p["gid"] / jnp.sqrt(p["vid"] + eps)
        idx = jnp.arange(cout)
        id_k = jnp.zeros((cout, cin, 3, 3), jnp.float32)
        id_k = id_k.at[idx, idx % cin, 1, 1].set(1.0)
        k = k + id_k * tid[:, None, None, None]
        b = b + p["bid"] - p["mid"] * tid
    return k, b


def repvgg_reference(x, p, eps=1e-5):
    """Faithful eval-mode emulation of the PyTorch RepVGGBlock forward (f32)."""
    def conv(x, w, pad):
        return jax.lax.conv_general_dilated(
            x, w, window_strides=(1, 1), padding=((pad, pad), (pad, pad)),
            dimension_numbers=("NCHW", "OIHW", "NCHW"))

    def bn(y, g, b, m, v):
        s = g / jnp.sqrt(v + eps)
        return y * s[None, :, None, None] + (b - m * s)[None, :, None, None]

    y = bn(conv(x, p["w3"], 1), p["g3"], p["b3"], p["m3"], p["v3"])
    y = y + bn(conv(x, p["w1"], 0), p["g1"], p["b1"], p["m1"], p["v1"])
    if "gid" in p:
        y = y + bn(x, p["gid"], p["bid"], p["mid"], p["vid"])
    return y * jax.nn.sigmoid(y)   # SiLU


def make_params(key, cin, cout, use_identity=True):
    ks = jax.random.split(key, 14)

    def bn_params(k0, k1, k2, k3, n):
        return (1.0 + 0.1 * jax.random.normal(k0, (n,), jnp.float32),
                0.1 * jax.random.normal(k1, (n,), jnp.float32),
                0.05 * jax.random.normal(k2, (n,), jnp.float32),
                jnp.abs(jax.random.normal(k3, (n,), jnp.float32)) + 0.5)

    p = {}
    p["w3"] = 0.1 * jax.random.normal(ks[0], (cout, cin, 3, 3), jnp.float32)
    p["g3"], p["b3"], p["m3"], p["v3"] = bn_params(ks[1], ks[2], ks[3], ks[4], cout)
    p["w1"] = 0.1 * jax.random.normal(ks[5], (cout, cin, 1, 1), jnp.float32)
    p["g1"], p["b1"], p["m1"], p["v1"] = bn_params(ks[6], ks[7], ks[8], ks[9], cout)
    if use_identity and cin == cout:
        p["gid"], p["bid"], p["mid"], p["vid"] = bn_params(
            ks[10], ks[11], ks[12], ks[13], cin)
    return p


if __name__ == "__main__":
    key = jax.random.PRNGKey(0)
    configs = [
        dict(B=2, Cin=8, Cout=8, H=16, W=16),   # identity branch active
        dict(B=2, Cin=4, Cout=8, H=16, W=16),   # no identity branch
    ]
    for i, cfg in enumerate(configs):
        kx, kp = jax.random.split(jax.random.fold_in(key, i))
        x = jax.random.normal(kx, (cfg["B"], cfg["Cin"], cfg["H"], cfg["W"]),
                              jnp.float32)
        # pre-round to bf16-representable values (kernel casts inputs to bf16)
        x = x.astype(jnp.bfloat16).astype(jnp.float32)

        params = make_params(kp, cfg["Cin"], cfg["Cout"])
        w_fused, b_fused = fuse_repvgg_params(params)

        out = repvgg_fused_forward(x, w_fused, b_fused)
        out = jax.block_until_ready(out)

        ref = repvgg_reference(x, params)
        assert out.shape == (cfg["B"], cfg["Cout"], cfg["H"], cfg["W"])
        assert jnp.allclose(out, ref, atol=5e-2, rtol=5e-2), \
            f"mismatch vs reference (config {i})"

    print("KERNEL_OK")
</pallas_src>

<mosaic_0001>
module attributes {stable_mosaic.version = 11 : i64} {
  func.func @_repvgg_kernel(%arg0: i32, %arg1: i32, %arg2: i32, %arg3: memref<1x18x18x8xbf16, #tpu.memory_space<vmem>>, %arg4: memref<3x24x128xbf16, #tpu.memory_space<vmem>>, %arg5: memref<1x128xf32, #tpu.memory_space<vmem>>, %arg6: memref<1x8x16x128xf32, #tpu.memory_space<vmem>>) attributes {dimension_semantics = [#tpu.dimension_semantics<parallel>, #tpu.dimension_semantics<parallel>, #tpu.dimension_semantics<parallel>], iteration_bounds = array<i64: 2, 2, 1>, scalar_prefetch = 0 : i64, scratch_operands = 0 : i64, tpu.core_type = #tpu.core_type<tc>, window_params = [{transform_indices = @transform_0, window_bounds = array<i64: 1, 18, 18, 8>}, {transform_indices = @transform_1, window_bounds = array<i64: 3, 24, 128>}, {transform_indices = @transform_2, window_bounds = array<i64: 1, 128>}, {transform_indices = @transform_3, window_bounds = array<i64: 1, 8, 16, 128>}]} {
    %c8_i32 = arith.constant 8 : i32
    %0 = arith.muli %arg1, %c8_i32 : i32
    %1 = tpu.assume_multiple %0, 8 : i32
    %c0 = arith.constant 0 : index
    %2 = arith.index_cast %1 : i32 to index
    %c0_0 = arith.constant 0 : index
    %c0_1 = arith.constant 0 : index
    %3 = vector.load %arg3[%c0, %2, %c0_0, %c0_1] : memref<1x18x18x8xbf16, #tpu.memory_space<vmem>>, vector<1x10x18x8xbf16>
    %4 = vector.shape_cast %3 : vector<1x10x18x8xbf16> to vector<10x18x8xbf16>
    %5 = vector.extract_strided_slice %4 {offsets = [0, 0, 0], sizes = [10, 16, 8], strides = [1, 1, 1]} : vector<10x18x8xbf16> to vector<10x16x8xbf16>
    %6 = vector.extract_strided_slice %4 {offsets = [0, 1, 0], sizes = [10, 16, 8], strides = [1, 1, 1]} : vector<10x18x8xbf16> to vector<10x16x8xbf16>
    %7 = vector.extract_strided_slice %4 {offsets = [0, 2, 0], sizes = [10, 16, 8], strides = [1, 1, 1]} : vector<10x18x8xbf16> to vector<10x16x8xbf16>
    %8 = tpu.concatenate %5, %6, %7 in 2 : vector<10x16x8xbf16>, vector<10x16x8xbf16>, vector<10x16x8xbf16> -> vector<10x16x24xbf16>
    %cst = arith.constant 0.000000e+00 : f32
    %9 = vector.broadcast %cst : f32 to vector<128x128xf32>
    %10 = vector.extract_strided_slice %8 {offsets = [0, 0, 0], sizes = [8, 16, 24], strides = [1, 1, 1]} : vector<10x16x24xbf16> to vector<8x16x24xbf16>
    %11 = vector.shape_cast %10 : vector<8x16x24xbf16> to vector<128x24xbf16>
    %c0_2 = arith.constant 0 : index
    %c0_3 = arith.constant 0 : index
    %c0_4 = arith.constant 0 : index
    %12 = vector.load %arg4[%c0_2, %c0_3, %c0_4] : memref<3x24x128xbf16, #tpu.memory_space<vmem>>, vector<1x24x128xbf16>
    %13 = vector.shape_cast %12 : vector<1x24x128xbf16> to vector<24x128xbf16>
    %cst_5 = arith.constant dense<0.000000e+00> : vector<128x128xf32>
    %14 = tpu.matmul %11, %13, %cst_5 {dimension_numbers = #tpu.dot_dimension_numbers<[1], [0], [0], [1], [0, 0, 1, 1], [], []>} : vector<128x24xbf16>, vector<24x128xbf16>, vector<128x128xf32> -> vector<128x128xf32>
    %15 = arith.addf %9, %14 : vector<128x128xf32>
    %16 = vector.extract_strided_slice %8 {offsets = [1, 0, 0], sizes = [8, 16, 24], strides = [1, 1, 1]} : vector<10x16x24xbf16> to vector<8x16x24xbf16>
    %17 = vector.shape_cast %16 : vector<8x16x24xbf16> to vector<128x24xbf16>
    %c1 = arith.constant 1 : index
    %c0_6 = arith.constant 0 : index
    %c0_7 = arith.constant 0 : index
    %18 = vector.load %arg4[%c1, %c0_6, %c0_7] : memref<3x24x128xbf16, #tpu.memory_space<vmem>>, vector<1x24x128xbf16>
    %19 = vector.shape_cast %18 : vector<1x24x128xbf16> to vector<24x128xbf16>
    %cst_8 = arith.constant dense<0.000000e+00> : vector<128x128xf32>
    %20 = tpu.matmul %17, %19, %cst_8 {dimension_numbers = #tpu.dot_dimension_numbers<[1], [0], [0], [1], [0, 0, 1, 1], [], []>} : vector<128x24xbf16>, vector<24x128xbf16>, vector<128x128xf32> -> vector<128x128xf32>
    %21 = arith.addf %15, %20 : vector<128x128xf32>
    %22 = vector.extract_strided_slice %8 {offsets = [2, 0, 0], sizes = [8, 16, 24], strides = [1, 1, 1]} : vector<10x16x24xbf16> to vector<8x16x24xbf16>
    %23 = vector.shape_cast %22 : vector<8x16x24xbf16> to vector<128x24xbf16>
    %c2 = arith.constant 2 : index
    %c0_9 = arith.constant 0 : index
    %c0_10 = arith.constant 0 : index
    %24 = vector.load %arg4[%c2, %c0_9, %c0_10] : memref<3x24x128xbf16, #tpu.memory_space<vmem>>, vector<1x24x128xbf16>
    %25 = vector.shape_cast %24 : vector<1x24x128xbf16> to vector<24x128xbf16>
    %cst_11 = arith.constant dense<0.000000e+00> : vector<128x128xf32>
    %26 = tpu.matmul %23, %25, %cst_11 {dimension_numbers = #tpu.dot_dimension_numbers<[1], [0], [0], [1], [0, 0, 1, 1], [], []>} : vector<128x24xbf16>, vector<24x128xbf16>, vector<128x128xf32> -> vector<128x128xf32>
    %27 = arith.addf %21, %26 : vector<128x128xf32>
    %c0_12 = arith.constant 0 : index
    %c0_13 = arith.constant 0 : index
    %28 = vector.load %arg5[%c0_12, %c0_13] : memref<1x128xf32, #tpu.memory_space<vmem>>, vector<1x128xf32>
    %29 = vector.broadcast %28 : vector<1x128xf32> to vector<128x128xf32>
    %30 = arith.addf %27, %29 : vector<128x128xf32>
    %cst_14 = arith.constant 0.000000e+00 : f32
    %31 = vector.broadcast %cst_14 : f32 to vector<128x128xf32>
    %32 = arith.subf %31, %30 : vector<128x128xf32>
    %33 = math.exp %32 : vector<128x128xf32>
    %cst_15 = arith.constant 1.000000e+00 : f32
    %34 = vector.broadcast %cst_15 : f32 to vector<128x128xf32>
    %35 = arith.addf %34, %33 : vector<128x128xf32>
    %cst_16 = arith.constant 1.000000e+00 : f32
    %36 = vector.broadcast %cst_16 : f32 to vector<128x128xf32>
    %37 = arith.divf %36, %35 : vector<128x128xf32>
    %38 = arith.mulf %30, %37 : vector<128x128xf32>
    %39 = vector.shape_cast %38 : vector<128x128xf32> to vector<1x8x16x128xf32>
    %c0_17 = arith.constant 0 : index
    %c0_18 = arith.constant 0 : index
    %c0_19 = arith.constant 0 : index
    %c0_20 = arith.constant 0 : index
    %40 = vector.load %arg6[%c0_17, %c0_18, %c0_19, %c0_20] : memref<1x8x16x128xf32, #tpu.memory_space<vmem>>, vector<1x8x16x128xf32>
    tpu.vector_store %arg6[%c0_17, %c0_18, %c0_19, %c0_20], %39 {strides = array<i32>} : memref<1x8x16x128xf32, #tpu.memory_space<vmem>>, vector<1x8x16x128xf32>,
    return
  }
  func.func @transform_0(%arg0: i32, %arg1: i32, %arg2: i32) -> (i32, i32, i32, i32) {
    %c0_i32 = arith.constant 0 : i32
    %c0_i32_0 = arith.constant 0 : i32
    %c0_i32_1 = arith.constant 0 : i32
    %c0_i32_2 = arith.constant 0 : i32
    return %arg0, %c0_i32, %c0_i32_0, %c0_i32_1 : i32, i32, i32, i32
  }
  func.func @transform_1(%arg0: i32, %arg1: i32, %arg2: i32) -> (i32, i32, i32) {
    %c0_i32 = arith.constant 0 : i32
    %c0_i32_0 = arith.constant 0 : i32
    %c0_i32_1 = arith.constant 0 : i32
    return %c0_i32, %c0_i32_0, %arg2 : i32, i32, i32
  }
  func.func @transform_2(%arg0: i32, %arg1: i32, %arg2: i32) -> (i32, i32) {
    %c0_i32 = arith.constant 0 : i32
    %c0_i32_0 = arith.constant 0 : i32
    return %c0_i32, %arg2 : i32, i32
  }
  func.func @transform_3(%arg0: i32, %arg1: i32, %arg2: i32) -> (i32, i32, i32, i32) {
    %c0_i32 = arith.constant 0 : i32
    %c0_i32_0 = arith.constant 0 : i32
    return %arg0, %arg1, %c0_i32, %arg2 : i32, i32, i32, i32
  }
}

</mosaic_0001>

<llo_original>
// kernel: repvgg_fused_forward.1
$region0: #{repvgg_fused_forward.1}
  #allocation0 [shape = 'u32[]', space=smem, size = 0x4, offset = 0x4, fixed_abs, tag = 'smem constant byte address 0x4 - core index']
  #allocation1 [shape = 'u32[144,128]{1,0:T(1,128)}', space=vmem, size = 0x12000, scoped, tag = 'internal scratch']
  %s0 = inlined_call_operand.vmem [shape: bf16[2,18,18,8], index: 0, kind: input, shape index: {}]
  %s1 = inlined_call_operand.vmem [shape: bf16[3,24,128], index: 1, kind: input, shape index: {}]
  %s2 = inlined_call_operand.vmem [shape: f32[1,128], index: 2, kind: input, shape index: {}]
  %s3 = inlined_call_operand.vmem [shape: f32[2,16,16,128], index: 3, kind: output, shape index: {}]
  %s4 = sld [smem:[#allocation0]]
  $region45: #{repvgg_fused_forward.1} parent=0
    _
  %s6 = ssub.s32 1, %s4
  %s7 = scalar_select 0, %s6, %s4
  loop: start=0, step=1, limit=6
  $region2: #{repvgg_fused_forward.1} parent=0 // loop_pre_header
    _
  $region3: #{repvgg_fused_forward.1} parent=0 // loop_header
    %s9 = sphi 0, %s13
    %p10 = scmp.ge.s32.totalorder %s9, 6
    %s16 = sphi 0, %s35
    %s17 = sphi 0, %s31
    %s18 = sphi 0, %s27
    %s19 = sphi 0, %s16
    %s20 = sphi 0, %s17
    %s21 = sphi 0, %s18
    %s22 = sphi 0, %s19
    %s23 = sphi 0, %s20
    %s24 = sphi 0, %s21
    %s38 = sphi 0, %s40
    %s41 = sphi 0, %s38
    %s42 = sphi 0, %s41
    %s58 = sphi 0, %s42
    %s64 = sphi 0, %s66
    %s67 = sphi 0, %s64
    %s68 = sphi 0, %s67
    %s84 = sphi 0, %s68
    %s90 = sphi 0, %s92
    %s93 = sphi 0, %s90
    %s94 = sphi 0, %s93
    %s110 = sphi 0, %s94
    %s120 = sphi 0, %s122
    %s123 = sphi 0, %s120
    %s124 = sphi 0, %s123
    %s140 = sphi 0, %s124
  $region4: #{repvgg_fused_forward.1} parent=0 // loop_header_branch
    %12 = sbr.rel (%p10) target = $region8
  $region5: #{repvgg_fused_forward.1} parent=0 // loop_body
    %s14 = ssub.s32 %s9, 1
    %s15 = ssub.s32 %s9, 2
    %s25 = sadd.s32 1, %s18
    %p26 = scmp.ge.s32.totalorder %s25, 1
    %s27 = scalar_select %p26, 0, %s25
    %s28 = sadd.s32 1, %s17
    %s29 = scalar_select %p26, %s28, %s17
    %p30 = scmp.ge.s32.totalorder %s29, 2
    %s31 = scalar_select %p30, 0, %s29
    %s32 = sadd.s32 1, %s16
    %s33 = scalar_select %p30, %s32, %s16
    %p34 = scmp.ge.s32.totalorder %s33, 2
    %s35 = scalar_select %p34, 0, %s33
    %s36 = ssub.s32 %s16, %s35
    %p37 = scmp.eq.s32.totalorder %s36, 0
    %s39 = sadd.s32 %s38, 1
    %s40 = scalar_select %p37, %s38, %s39
    %p43 = pneg %p37
    %p44 = scmp.eq.s32.totalorder %s9, 3
    %p45 = por %p43, %p44
    %p46 = scmp.ne.s32.totalorder %s38, %s41
    %p47 = scmp.eq.s32.totalorder %s9, 0
    %p48 = por %p46, %p47
    %p49 = scmp.ne.s32.totalorder %s38, %s41
    %p50 = scmp.eq.s32.totalorder %s14, 3
    %p51 = por %p49, %p50
    %p52 = scmp.ne.s32.totalorder %s41, %s42
    %p53 = scmp.eq.s32.totalorder %s14, 0
    %p54 = por %p52, %p53
    %p55 = scmp.ne.s32.totalorder %s41, %s42
    %p56 = scmp.eq.s32.totalorder %s15, 3
    %p57 = por %p55, %p56
    %p59 = scmp.ne.s32.totalorder %s42, %s58
    %p60 = scmp.eq.s32.totalorder %s15, 0
    %p61 = por %p59, %p60
    %s62 = ssub.s32 %s18, %s27
    %p63 = scmp.eq.s32.totalorder %s62, 0
    %s65 = sadd.s32 %s64, 1
    %s66 = scalar_select %p63, %s64, %s65
    %p69 = pneg %p63
    %p70 = scmp.eq.s32.totalorder %s9, 3
    %p71 = por %p69, %p70
    %p72 = scmp.ne.s32.totalorder %s64, %s67
    %p73 = scmp.eq.s32.totalorder %s9, 0
    %p74 = por %p72, %p73
    %p75 = scmp.ne.s32.totalorder %s64, %s67
    %p76 = scmp.eq.s32.totalorder %s14, 3
    %p77 = por %p75, %p76
    %p78 = scmp.ne.s32.totalorder %s67, %s68
    %p79 = scmp.eq.s32.totalorder %s14, 0
    %p80 = por %p78, %p79
    %p81 = scmp.ne.s32.totalorder %s67, %s68
    %p82 = scmp.eq.s32.totalorder %s15, 3
    %p83 = por %p81, %p82
    %p85 = scmp.ne.s32.totalorder %s68, %s84
    %p86 = scmp.eq.s32.totalorder %s15, 0
    %p87 = por %p85, %p86
    %s88 = ssub.s32 %s18, %s27
    %p89 = scmp.eq.s32.totalorder %s88, 0
    %s91 = sadd.s32 %s90, 1
    %s92 = scalar_select %p89, %s90, %s91
    %p95 = pneg %p89
    %p96 = scmp.eq.s32.totalorder %s9, 3
    %p97 = por %p95, %p96
    %p98 = scmp.ne.s32.totalorder %s90, %s93
    %p99 = scmp.eq.s32.totalorder %s9, 0
    %p100 = por %p98, %p99
    %p101 = scmp.ne.s32.totalorder %s90, %s93
    %p102 = scmp.eq.s32.totalorder %s14, 3
    %p103 = por %p101, %p102
    %p104 = scmp.ne.s32.totalorder %s93, %s94
    %p105 = scmp.eq.s32.totalorder %s14, 0
    %p106 = por %p104, %p105
    %p107 = scmp.ne.s32.totalorder %s93, %s94
    %p108 = scmp.eq.s32.totalorder %s15, 3
    %p109 = por %p107, %p108
    %p111 = scmp.ne.s32.totalorder %s94, %s110
    %p112 = scmp.eq.s32.totalorder %s15, 0
    %p113 = por %p111, %p112
    %s114 = ssub.s32 %s16, %s35
    %s115 = ssub.s32 %s17, %s31
    %s116 = sor.u32 %s114, %s115
    %s117 = ssub.s32 %s18, %s27
    %s118 = sor.u32 %s116, %s117
    %p119 = scmp.eq.s32.totalorder %s118, 0
    %s121 = sadd.s32 %s120, 1
    %s122 = scalar_select %p119, %s120, %s121
    %p125 = pneg %p119
    %p126 = scmp.eq.s32.totalorder %s9, 3
    %p127 = por %p125, %p126
    %p128 = scmp.ne.s32.totalorder %s120, %s123
    %p129 = scmp.eq.s32.totalorder %s9, 0
    %p130 = por %p128, %p129
    %p131 = scmp.ne.s32.totalorder %s120, %s123
    %p132 = scmp.eq.s32.totalorder %s14, 3
    %p133 = por %p131, %p132
    %p134 = scmp.ne.s32.totalorder %s123, %s124
    %p135 = scmp.eq.s32.totalorder %s14, 0
    %p136 = por %p134, %p135
    %p137 = scmp.ne.s32.totalorder %s123, %s124
    %p138 = scmp.eq.s32.totalorder %s15, 3
    %p139 = por %p137, %p138
    %p141 = scmp.ne.s32.totalorder %s124, %s140
    %p142 = scmp.eq.s32.totalorder %s15, 0
    %p143 = por %p141, %p142
    %p144 = scmp.le.s32.totalorder 1, %s9
    %p145 = scmp.lt.s32.totalorder %s9, 5
    %p146 = pnand %p144, %p145
    %p147 = pneg %p146
    // Predicated region
    $region9: #{repvgg_fused_forward.1} parent=5 // pred_check
      _
    $region10: #{repvgg_fused_forward.1} parent=5 // pred_check_branch
      %149 = sbr.rel (%p146) target = $region12
    $region11: #{repvgg_fused_forward.1} parent=5 // pred_region
      %s150 = ssub.s32 %s9, 1
      // Predicated region
      $region13: #{repvgg_fused_forward.1} parent=11 // pred_check
        %p151 = pneg %p80
      $region14: #{repvgg_fused_forward.1} parent=11 // pred_check_branch
        %153 = sbr.rel (%p151) target = $region16
      $region15: #{repvgg_fused_forward.1} parent=11 // pred_region
        %p154 = scmp.lt.s32.totalorder %s21, 0
        %s155 = scalar_select %p154, %s21, 0
        %s156 = smul.addr %s155, 4
        %s157 = scalar_lea.vmem %s1, %s156
      $region16: #{repvgg_fused_forward.1} parent=11 // pred_fallthru
        _
      // Predicated region
      $region17: #{repvgg_fused_forward.1} parent=11 // pred_check
        %p158 = pneg %p106
      $region18: #{repvgg_fused_forward.1} parent=11 // pred_check_branch
        %160 = sbr.rel (%p158) target = $region20
      $region19: #{repvgg_fused_forward.1} parent=11 // pred_region
        %p161 = scmp.lt.s32.totalorder %s21, 0
        %s162 = scalar_select %p161, %s21, 0
        %s163 = scalar_lea.vmem %s2, %s162
      $region20: #{repvgg_fused_forward.1} parent=11 // pred_fallthru
        _
    $region12: #{repvgg_fused_forward.1} parent=5 // pred_fallthru
      _
    %p164 = scmp.lt.s32.totalorder %s9, 4
    // Predicated region
    $region21: #{repvgg_fused_forward.1} parent=5 // pred_check
      %p165 = pneg %p164
    $region22: #{repvgg_fused_forward.1} parent=5 // pred_check_branch
      %167 = sbr.rel (%p165) target = $region24
    $region23: #{repvgg_fused_forward.1} parent=5 // pred_region
      // Predicated region
      $region25: #{repvgg_fused_forward.1} parent=23 // pred_check
        %p168 = pneg %p48
      $region26: #{repvgg_fused_forward.1} parent=23 // pred_check_branch
        %170 = sbr.rel (%p168) target = $region28
      $region27: #{repvgg_fused_forward.1} parent=23 // pred_region
        %p171 = scmp.lt.s32.totalorder %s16, 1
        %s172 = scalar_select %p171, %s16, 1
        %s173 = smul.addr %s172, 54
        %s174 = smul.addr %s173, 4
        %s175 = scalar_lea.vmem %s0, %s174
      $region28: #{repvgg_fused_forward.1} parent=23 // pred_fallthru
        _
    $region24: #{repvgg_fused_forward.1} parent=5 // pred_fallthru
      _
    %p176 = scmp.le.s32.totalorder 1, %s9
    %p177 = scmp.lt.s32.totalorder %s9, 5
    %p178 = pnand %p176, %p177
    %p179 = pneg %p178
    // Predicated region
    $region29: #{repvgg_fused_forward.1} parent=5 // pred_check
      _
    $region30: #{repvgg_fused_forward.1} parent=5 // pred_check_branch
      %181 = sbr.rel (%p178) target = $region32
    $region31: #{repvgg_fused_forward.1} parent=5 // pred_region
      %s182 = ssub.s32 %s9, 1
      %p183 = scmp.lt.s32.totalorder %s19, 1
      %s184 = scalar_select %p183, %s19, 1
      %s185 = smul.addr %s184, 54
      %s186 = smul.addr %s185, 4
      %s187 = scalar_lea.vmem %s0, %s186
      %p188 = pneg %p54
      %p189 = pneg %p51
      %p190 = scmp.lt.s32.totalorder %s21, 0
      %s191 = scalar_select %p190, %s21, 0
      %s192 = smul.addr %s191, 4
      %s193 = scalar_lea.vmem %s1, %s192
      %p194 = pneg %p80
      %p195 = pneg %p77
      %p196 = scmp.lt.s32.totalorder %s21, 0
      %s197 = scalar_select %p196, %s21, 0
      %s198 = scalar_lea.vmem %s2, %s197
      %p199 = pneg %p106
      %p200 = pneg %p103
      %p201 = pneg %p136
      %p202 = pneg %p133
      %s203 = smul.u32 8, %s20
      %p204 = scmp.lt.s32.totalorder %s19, 1
      %s205 = scalar_select %p204, %s19, 1
      %p206 = scmp.lt.s32.totalorder %s203, 15
      %s207 = scalar_select %p206, %s203, 15
      %p208 = scmp.lt.s32.totalorder %s21, 0
      %s209 = scalar_select %p208, %s21, 0
      %s210 = smul.addr %s207, 2
      %s211 = sadd.s32 %s209, %s210
      %s212 = smul.addr %s205, 32
      %s213 = sadd.s32 %s211, %s212
      %s214 = smul.addr %s213, 8
      %s215 = scalar_lea.vmem %s3, %s214
      %p216 = scmp.lt.s32.totalorder %s19, 1
      %s217 = scalar_select %p216, %s19, 1
      %s218 = smul.addr %s217, 54
      %s219 = smul.addr %s218, 4
      %s220 = scalar_lea.vmem %s0, %s219
      %p221 = scmp.lt.s32.totalorder %s21, 0
      %s222 = scalar_select %p221, %s21, 0
      %s223 = smul.addr %s222, 4
      %s224 = scalar_lea.vmem %s1, %s223
      %p225 = scmp.lt.s32.totalorder %s21, 0
      %s226 = scalar_select %p225, %s21, 0
      %s227 = scalar_lea.vmem %s2, %s226
      %s228 = smul.u32 8, %s20
      %p229 = scmp.lt.s32.totalorder %s19, 1
      %s230 = scalar_select %p229, %s19, 1
      %p231 = scmp.lt.s32.totalorder %s228, 15
      %s232 = scalar_select %p231, %s228, 15
      %p233 = scmp.lt.s32.totalorder %s21, 0
      %s234 = scalar_select %p233, %s21, 0
      %s235 = smul.addr %s232, 2
      %s236 = sadd.s32 %s234, %s235
      %s237 = smul.addr %s230, 32
      %s238 = sadd.s32 %s236, %s237
      %s239 = smul.addr %s238, 8
      %s240 = scalar_lea.vmem %s3, %s239
      %s241 = smul.u32 8, %s20
      %s243 = smul.u32 %s20, 8
      %s244 = smul.u32 %s243, 3
      %s245 = smul.addr %s244, 4
      %s246 = scalar_lea.vmem %s220, %s245
      %v247 = vld [vmem:[%s246] sm:$0xf]
      %v248 = vld [vmem:[%s246 + $0x4] sm:$0xf]
      %v249 = vld [vmem:[%s246 + $0x8] sm:$0x1]
      %v250 = vld [vmem:[%s246 + $0xc] sm:$0xf]
      %v251 = vld [vmem:[%s246 + $0x10] sm:$0xf]
      %v252 = vld [vmem:[%s246 + $0x14] sm:$0x1]
      %v253 = vld [vmem:[%s246 + $0x18] sm:$0xf]
      %v254 = vld [vmem:[%s246 + $0x1c] sm:$0xf]
      %v255 = vld [vmem:[%s246 + $0x20] sm:$0x1]
      %v256 = vld [vmem:[%s246 + $0x24] sm:$0xf]
      %v257 = vld [vmem:[%s246 + $0x28] sm:$0xf]
      %v258 = vld [vmem:[%s246 + $0x2c] sm:$0x1]
      %v259 = vld [vmem:[%s246 + $0x30] sm:$0xf]
      %v260 = vld [vmem:[%s246 + $0x34] sm:$0xf]
      %v261 = vld [vmem:[%s246 + $0x38] sm:$0x1]
      %v262 = vld [vmem:[%s246 + $0x3c] sm:$0xf]
      %v263 = vld [vmem:[%s246 + $0x40] sm:$0xf]
      %v264 = vld [vmem:[%s246 + $0x44] sm:$0x1]
      %v265 = vld [vmem:[%s246 + $0x48] sm:$0xf]
      %v266 = vld [vmem:[%s246 + $0x4c] sm:$0xf]
      %v267 = vld [vmem:[%s246 + $0x50] sm:$0x1]
      %v268 = vld [vmem:[%s246 + $0x54] sm:$0xf]
      %v269 = vld [vmem:[%s246 + $0x58] sm:$0xf]
      %v270 = vld [vmem:[%s246 + $0x5c] sm:$0x1]
      %v271 = vld [vmem:[%s246 + $0x60] sm:$0xf]
      %v272 = vld [vmem:[%s246 + $0x64] sm:$0xf]
      %v273 = vld [vmem:[%s246 + $0x68] sm:$0x1]
      %v274 = vld [vmem:[%s246 + $0x6c] sm:$0xf]
      %v275 = vld [vmem:[%s246 + $0x70] sm:$0xf]
      %v276 = vld [vmem:[%s246 + $0x74] sm:$0x1]
      %v297 = vunpack.c.l.b16 %v247
      %v298 = vunpack.c.l.b16 %v248
      %v299 = vunpack.c.l.b16 %v250
      %v300 = vunpack.c.l.b16 %v251
      %v301 = vunpack.c.l.b16 %v253
      %v302 = vunpack.c.l.b16 %v254
      %v303 = vunpack.c.l.b16 %v256
      %v304 = vunpack.c.l.b16 %v257
      %v305 = vunpack.c.l.b16 %v259
      %v306 = vunpack.c.l.b16 %v260
      %v307 = vunpack.c.l.b16 %v262
      %v308 = vunpack.c.l.b16 %v263
      %v309 = vunpack.c.l.b16 %v265
      %v310 = vunpack.c.l.b16 %v266
      %v311 = vunpack.c.l.b16 %v268
      %v312 = vunpack.c.l.b16 %v269
      %v313 = vunpack.c.l.b16 %v271
      %v314 = vunpack.c.l.b16 %v272
      %v315 = vunpack.c.l.b16 %v274
      %v316 = vunpack.c.l.b16 %v275
      %v317 = vpack.c.b16 %v298, %v297
      %v318 = vpack.c.b16 %v300, %v299
      %v319 = vpack.c.b16 %v302, %v301
      %v320 = vpack.c.b16 %v304, %v303
      %v321 = vpack.c.b16 %v306, %v305
      %v322 = vpack.c.b16 %v308, %v307
      %v323 = vpack.c.b16 %v310, %v309
      %v324 = vpack.c.b16 %v312, %v311
      %v325 = vpack.c.b16 %v314, %v313
      %v326 = vpack.c.b16 %v316, %v315
      %v337 = vunpack.c.l.b16 %v249
      %v338 = vunpack.c.l.b16 %v252
      %v339 = vunpack.c.l.b16 %v255
      %v340 = vunpack.c.l.b16 %v258
      %v341 = vunpack.c.l.b16 %v261
      %v342 = vunpack.c.l.b16 %v264
      %v343 = vunpack.c.l.b16 %v267
      %v344 = vunpack.c.l.b16 %v270
      %v345 = vunpack.c.l.b16 %v273
      %v346 = vunpack.c.l.b16 %v276
      %v347 = vpack.c.b16 %v337, %v337
      %v348 = vpack.c.b16 %v338, %v338
      %v349 = vpack.c.b16 %v339, %v339
      %v350 = vpack.c.b16 %v340, %v340
      %v351 = vpack.c.b16 %v341, %v341
      %v352 = vpack.c.b16 %v342, %v342
      %v353 = vpack.c.b16 %v343, %v343
      %v354 = vpack.c.b16 %v344, %v344
      %v355 = vpack.c.b16 %v345, %v345
      %v356 = vpack.c.b16 %v346, %v346
      %vm357 = vsmask.f32 7424
      %v359 = vshrl.u32 %v317, 16
      %v361 = vshll.u32 %v317, 16
      %v363 = vrot.slane %v361, 1
      %v364 = vor.u32 %v359, %v363
      %v366 = vshll.u32 %v347, 16
      %v368 = vrot.slane %v366, 1
      %v369 = vsel %vm357, %v364, %v368
      %v371 = vshrl.u32 %v318, 16
      %v373 = vshll.u32 %v318, 16
      %v375 = vrot.slane %v373, 1
      %v376 = vor.u32 %v371, %v375
      %v378 = vshll.u32 %v348, 16
      %v380 = vrot.slane %v378, 1
      %v381 = vsel %vm357, %v376, %v380
      %v383 = vshrl.u32 %v319, 16
      %v385 = vshll.u32 %v319, 16
      %v387 = vrot.slane %v385, 1
      %v388 = vor.u32 %v383, %v387
      %v390 = vshll.u32 %v349, 16
      %v392 = vrot.slane %v390, 1
      %v393 = vsel %vm357, %v388, %v392
      %v395 = vshrl.u32 %v320, 16
      %v397 = vshll.u32 %v320, 16
      %v399 = vrot.slane %v397, 1
      %v400 = vor.u32 %v395, %v399
      %v402 = vshll.u32 %v350, 16
      %v404 = vrot.slane %v402, 1
      %v405 = vsel %vm357, %v400, %v404
      %v407 = vshrl.u32 %v321, 16
      %v409 = vshll.u32 %v321, 16
      %v411 = vrot.slane %v409, 1
      %v412 = vor.u32 %v407, %v411
      %v414 = vshll.u32 %v351, 16
      %v416 = vrot.slane %v414, 1
      %v417 = vsel %vm357, %v412, %v416
      %v419 = vshrl.u32 %v322, 16
      %v421 = vshll.u32 %v322, 16
      %v423 = vrot.slane %v421, 1
      %v424 = vor.u32 %v419, %v423
      %v426 = vshll.u32 %v352, 16
      %v428 = vrot.slane %v426, 1
      %v429 = vsel %vm357, %v424, %v428
      %v431 = vshrl.u32 %v323, 16
      %v433 = vshll.u32 %v323, 16
      %v435 = vrot.slane %v433, 1
      %v436 = vor.u32 %v431, %v435
      %v438 = vshll.u32 %v353, 16
      %v440 = vrot.slane %v438, 1
      %v441 = vsel %vm357, %v436, %v440
      %v443 = vshrl.u32 %v324, 16
      %v445 = vshll.u32 %v324, 16
      %v447 = vrot.slane %v445, 1
      %v448 = vor.u32 %v443, %v447
      %v450 = vshll.u32 %v354, 16
      %v452 = vrot.slane %v450, 1
      %v453 = vsel %vm357, %v448, %v452
      %v455 = vshrl.u32 %v325, 16
      %v457 = vshll.u32 %v325, 16
      %v459 = vrot.slane %v457, 1
      %v460 = vor.u32 %v455, %v459
      %v462 = vshll.u32 %v355, 16
      %v464 = vrot.slane %v462, 1
      %v465 = vsel %vm357, %v460, %v464
      %v467 = vshrl.u32 %v326, 16
      %v469 = vshll.u32 %v326, 16
      %v471 = vrot.slane %v469, 1
      %v472 = vor.u32 %v467, %v471
      %v474 = vshll.u32 %v356, 16
      %v476 = vrot.slane %v474, 1
      %v477 = vsel %vm357, %v472, %v476
      %478 = vrot.lane.b32.xlu0 %v369, 8
      %v479 = vpop.permute.xlu0 %478
      %480 = vrot.lane.b32.xlu0 %v381, 8
      %v481 = vpop.permute.xlu0 %480
      %482 = vrot.lane.b32.xlu0 %v393, 8
      %v483 = vpop.permute.xlu0 %482
      %484 = vrot.lane.b32.xlu0 %v405, 8
      %v485 = vpop.permute.xlu0 %484
      %486 = vrot.lane.b32.xlu0 %v417, 8
      %v487 = vpop.permute.xlu0 %486
      %488 = vrot.lane.b32.xlu0 %v429, 8
      %v489 = vpop.permute.xlu0 %488
      %490 = vrot.lane.b32.xlu0 %v441, 8
      %v491 = vpop.permute.xlu0 %490
      %492 = vrot.lane.b32.xlu0 %v453, 8
      %v493 = vpop.permute.xlu0 %492
      %494 = vrot.lane.b32.xlu0 %v465, 8
      %v495 = vpop.permute.xlu0 %494
      %496 = vrot.lane.b32.xlu0 %v477, 8
      %v497 = vpop.permute.xlu0 %496
      %vm498 = vcmask 1046528
      %v499 = vrot.slane %v317, 1
      %v500 = vrot.slane %v347, 1
      %v501 = vsel %vm498, %v499, %v500
      %v502 = vrot.slane %v318, 1
      %v503 = vrot.slane %v348, 1
      %v504 = vsel %vm498, %v502, %v503
      %v505 = vrot.slane %v319, 1
      %v506 = vrot.slane %v349, 1
      %v507 = vsel %vm498, %v505, %v506
      %v508 = vrot.slane %v320, 1
      %v509 = vrot.slane %v350, 1
      %v510 = vsel %vm498, %v508, %v509
      %v511 = vrot.slane %v321, 1
      %v512 = vrot.slane %v351, 1
      %v513 = vsel %vm498, %v511, %v512
      %v514 = vrot.slane %v322, 1
      %v515 = vrot.slane %v352, 1
      %v516 = vsel %vm498, %v514, %v515
      %v517 = vrot.slane %v323, 1
      %v518 = vrot.slane %v353, 1
      %v519 = vsel %vm498, %v517, %v518
      %v520 = vrot.slane %v324, 1
      %v521 = vrot.slane %v354, 1
      %v522 = vsel %vm498, %v520, %v521
      %v523 = vrot.slane %v325, 1
      %v524 = vrot.slane %v355, 1
      %v525 = vsel %vm498, %v523, %v524
      %v526 = vrot.slane %v326, 1
      %v527 = vrot.slane %v356, 1
      %v528 = vsel %vm498, %v526, %v527
      %529 = vrot.lane.b32.xlu0 %v501, 16
      %v530 = vpop.permute.xlu0 %529
      %531 = vrot.lane.b32.xlu0 %v504, 16
      %v532 = vpop.permute.xlu0 %531
      %533 = vrot.lane.b32.xlu0 %v507, 16
      %v534 = vpop.permute.xlu0 %533
      %535 = vrot.lane.b32.xlu0 %v510, 16
      %v536 = vpop.permute.xlu0 %535
      %537 = vrot.lane.b32.xlu0 %v513, 16
      %v538 = vpop.permute.xlu0 %537
      %539 = vrot.lane.b32.xlu0 %v516, 16
      %v540 = vpop.permute.xlu0 %539
      %541 = vrot.lane.b32.xlu0 %v519, 16
      %v542 = vpop.permute.xlu0 %541
      %543 = vrot.lane.b32.xlu0 %v522, 16
      %v544 = vpop.permute.xlu0 %543
      %545 = vrot.lane.b32.xlu0 %v525, 16
      %v546 = vpop.permute.xlu0 %545
      %547 = vrot.lane.b32.xlu0 %v528, 16
      %v548 = vpop.permute.xlu0 %547
      %vm549 = vcmask 64512
      %v551 = vsel %vm549, %v317, %v479
      %v553 = vsel %vm549, %v318, %v481
      %v555 = vsel %vm549, %v319, %v483
      %v557 = vsel %vm549, %v320, %v485
      %v559 = vsel %vm549, %v321, %v487
      %v561 = vsel %vm549, %v322, %v489
      %v563 = vsel %vm549, %v323, %v491
      %v565 = vsel %vm549, %v324, %v493
      %v567 = vsel %vm549, %v325, %v495
      %v569 = vsel %vm549, %v326, %v497
      %vm570 = vcmask 130048
      %v572 = vsel %vm570, %v551, %v530
      %v574 = vsel %vm570, %v553, %v532
      %v576 = vsel %vm570, %v555, %v534
      %v578 = vsel %vm570, %v557, %v536
      %v580 = vsel %vm570, %v559, %v538
      %v582 = vsel %vm570, %v561, %v540
      %v584 = vsel %vm570, %v563, %v542
      %v586 = vsel %vm570, %v565, %v544
      %v588 = vsel %vm570, %v567, %v546
      %v590 = vsel %vm570, %v569, %v548
      %v591 = vld [vmem:[%s224] sm:$0xf]
      %v592 = vld [vmem:[%s224 + $0x4] sm:$0xf]
      %v593 = vld [vmem:[%s224 + $0x8] sm:$0xf]
      %s594 = scalar_lea.vmem %s224, 12
      %v595 = vld [vmem:[%s594] sm:$0xf]
      %v596 = vld [vmem:[%s594 + $0x4] sm:$0xf]
      %v597 = vld [vmem:[%s594 + $0x8] sm:$0xf]
      %v601 = vunpack.c.l.b16 %v595
      %v602 = vunpack.c.l.b16 %v596
      %v603 = vunpack.c.l.b16 %v597
      %v604 = vpack.c.b16 %v602, %v601
      %v605 = vpack.c.b16 %v603, %v603
      %vm607 = vcmask 195584
      %v608 = vsel %vm607, %v574, 0
      %v610 = vsel %vm607, %v576, 0
      %v612 = vsel %vm607, %v578, 0
      %v614 = vsel %vm607, %v580, 0
      %v616 = vsel %vm607, %v582, 0
      %v618 = vsel %vm607, %v584, 0
      %v620 = vsel %vm607, %v586, 0
      %v622 = vsel %vm607, %v588, 0
      %vm624 = vcmask 1043456
      %v626 = vsel %vm624, %v605, 0
      %628 = vmatprep.subr.bf16.mxu0 0
      %629 = vmatpush1.bf16.msra.mxu0 %v604
      %630 = vmatprep.subr.bf16.mxu0 0
      %631 = vmatpush1.bf16.msra.mxu0 %v626
      %632 = vmatprep.subr.bf16.mxu0 0
      %633 = vmatpush1.bf16.msra.mxu0 0
      %634 = vmatprep.subr.bf16.mxu0 0
      %635 = vmatpush1.bf16.msra.mxu0 0
      %636 = vmatprep.subr.bf16.mxu0 0
      %637 = vmatpush1.bf16.msra.mxu0 0
      %638 = vmatprep.subr.bf16.mxu0 0
      %639 = vmatpush1.bf16.msra.mxu0 0
      %640 = vmatprep.subr.bf16.mxu0 0
      %641 = vmatpush1.bf16.msra.mxu0 0
      %642 = vmatprep.subr.bf16.mxu0 0
      %643 = vmatpush1.bf16.msra.mxu0 0
      %644 = vmatprep.subr.bf16.mxu0 0
      %645 = vmatpush1.bf16.msra.mxu0 0
      %646 = vmatprep.subr.bf16.mxu0 0
      %647 = vmatpush1.bf16.msra.mxu0 0
      %648 = vmatprep.subr.bf16.mxu0 0
      %649 = vmatpush1.bf16.msra.mxu0 0
      %650 = vmatprep.subr.bf16.mxu0 0
      %651 = vmatpush1.bf16.msra.mxu0 0
      %652 = vmatprep.subr.bf16.mxu0 0
      %653 = vmatpush1.bf16.msra.mxu0 0
      %654 = vmatprep.subr.bf16.mxu0 0
      %655 = vmatpush1.bf16.msra.mxu0 0
      %656 = vmatprep.subr.bf16.mxu0 0
      %657 = vmatpush1.bf16.msra.mxu0 0
      %658 = vmatprep.subr.bf16.mxu0 0
      %659 = vmatpush1.bf16.msra.mxu0 0
      %660 = vmatprep.mubr.bf16.mxu0 0
      %661 = vmatmul.mubr.bf16.gmra.mrb[0].mxu0 %v608
      %v662 = vpop.f32.mrb[0].mxu0
      %v663 = vadd.f32 0.0, %v662
      %v664 = vpop.f32.mrb[0].mxu0
      %v665 = vpop.f32.mrb[0].mxu0
      %v666 = vadd.f32 0.0, %v665
      %v667 = vpop.f32.mrb[0].mxu0
      %668 = vmatprep.mubr.bf16.mxu0 0
      %669 = vmatmul.mubr.bf16.gmra.mrb[0].mxu0 %v610
      %v670 = vpop.f32.mrb[0].mxu0
      %v671 = vadd.f32 0.0, %v670
      %v672 = vpop.f32.mrb[0].mxu0
      %v673 = vpop.f32.mrb[0].mxu0
      %v674 = vadd.f32 0.0, %v673
      %v675 = vpop.f32.mrb[0].mxu0
      %676 = vmatprep.mubr.bf16.mxu0 0
      %677 = vmatmul.mubr.bf16.gmra.mrb[0].mxu0 %v612
      %v678 = vpop.f32.mrb[0].mxu0
      %v679 = vadd.f32 0.0, %v678
      %v680 = vpop.f32.mrb[0].mxu0
      %v681 = vpop.f32.mrb[0].mxu0
      %v682 = vadd.f32 0.0, %v681
      %v683 = vpop.f32.mrb[0].mxu0
      %684 = vmatprep.mubr.bf16.mxu0 0
      %685 = vmatmul.mubr.bf16.gmra.mrb[0].mxu0 %v614
      %v686 = vpop.f32.mrb[0].mxu0
      %v687 = vadd.f32 0.0, %v686
      %v688 = vpop.f32.mrb[0].mxu0
      %v689 = vpop.f32.mrb[0].mxu0
      %v690 = vadd.f32 0.0, %v689
      %v691 = vpop.f32.mrb[0].mxu0
      %692 = vmatprep.mubr.bf16.mxu0 0
      %693 = vmatmul.mubr.bf16.gmra.mrb[0].mxu0 %v616
      %v694 = vpop.f32.mrb[0].mxu0
      %v695 = vadd.f32 0.0, %v694
      %v696 = vpop.f32.mrb[0].mxu0
      %v697 = vpop.f32.mrb[0].mxu0
      %v698 = vadd.f32 0.0, %v697
      %v699 = vpop.f32.mrb[0].mxu0
      %700 = vmatprep.mubr.bf16.mxu0 0
      %701 = vmatmul.mubr.bf16.gmra.mrb[0].mxu0 %v618
      %v702 = vpop.f32.mrb[0].mxu0
      %v703 = vadd.f32 0.0, %v702
      %v704 = vpop.f32.mrb[0].mxu0
      %v705 = vpop.f32.mrb[0].mxu0
      %v706 = vadd.f32 0.0, %v705
      %v707 = vpop.f32.mrb[0].mxu0
      %708 = vmatprep.mubr.bf16.mxu0 0
      %709 = vmatmul.mubr.bf16.gmra.mrb[0].mxu0 %v620
      %v710 = vpop.f32.mrb[0].mxu0
      %v711 = vadd.f32 0.0, %v710
      %v712 = vpop.f32.mrb[0].mxu0
      %v713 = vpop.f32.mrb[0].mxu0
      %v714 = vadd.f32 0.0, %v713
      %v715 = vpop.f32.mrb[0].mxu0
      %716 = vmatprep.mubr.bf16.mxu0 0
      %717 = vmatmul.mubr.bf16.gmra.mrb[0].mxu0 %v622
      %v718 = vpop.f32.mrb[0].mxu0
      %v719 = vadd.f32 0.0, %v718
      %v720 = vpop.f32.mrb[0].mxu0
      %v721 = vpop.f32.mrb[0].mxu0
      %v722 = vadd.f32 0.0, %v721
      %v723 = vpop.f32.mrb[0].mxu0
      %724 = vdwg.mxu0
      %v728 = vunpack.c.l.b16 %v591
      %v729 = vunpack.c.l.b16 %v592
      %v730 = vunpack.c.l.b16 %v593
      %v731 = vpack.c.b16 %v729, %v728
      %v732 = vpack.c.b16 %v730, %v730
      %v734 = vsel %vm607, %v572, 0
      %v737 = vsel %vm624, %v732, 0
      %739 = vmatprep.subr.bf16.mxu0 0
      %740 = vmatpush1.bf16.msra.mxu0 %v731
      %741 = vmatprep.subr.bf16.mxu0 0
      %742 = vmatpush1.bf16.msra.mxu0 %v737
      %743 = vmatprep.subr.bf16.mxu0 0
      %744 = vmatpush1.bf16.msra.mxu0 0
      %745 = vmatprep.subr.bf16.mxu0 0
      %746 = vmatpush1.bf16.msra.mxu0 0
      %747 = vmatprep.subr.bf16.mxu0 0
      %748 = vmatpush1.bf16.msra.mxu0 0
      %749 = vmatprep.subr.bf16.mxu0 0
      %750 = vmatpush1.bf16.msra.mxu0 0
      %751 = vmatprep.subr.bf16.mxu0 0
      %752 = vmatpush1.bf16.msra.mxu0 0
      %753 = vmatprep.subr.bf16.mxu0 0
      %754 = vmatpush1.bf16.msra.mxu0 0
      %755 = vmatprep.subr.bf16.mxu0 0
      %756 = vmatpush1.bf16.msra.mxu0 0
      %757 = vmatprep.subr.bf16.mxu0 0
      %758 = vmatpush1.bf16.msra.mxu0 0
      %759 = vmatprep.subr.bf16.mxu0 0
      %760 = vmatpush1.bf16.msra.mxu0 0
      %761 = vmatprep.subr.bf16.mxu0 0
      %762 = vmatpush1.bf16.msra.mxu0 0
      %763 = vmatprep.subr.bf16.mxu0 0
      %764 = vmatpush1.bf16.msra.mxu0 0
      %765 = vmatprep.subr.bf16.mxu0 0
      %766 = vmatpush1.bf16.msra.mxu0 0
      %767 = vmatprep.subr.bf16.mxu0 0
      %768 = vmatpush1.bf16.msra.mxu0 0
      %769 = vmatprep.subr.bf16.mxu0 0
      %770 = vmatpush1.bf16.msra.mxu0 0
      %771 = vmatprep.mubr.bf16.mxu0 0
      %772 = vmatmul.mubr.bf16.gmra.mrb[0].mxu0 %v734
      %v773 = vpop.f32.mrb[0].mxu0
      %v774 = vadd.f32 %v663, %v773
      %v775 = vpop.f32.mrb[0].mxu0
      %v776 = vpop.f32.mrb[0].mxu0
      %v777 = vadd.f32 %v666, %v776
      %v778 = vpop.f32.mrb[0].mxu0
      %779 = vmatprep.mubr.bf16.mxu0 0
      %780 = vmatmul.mubr.bf16.gmra.mrb[0].mxu0 %v608
      %v781 = vpop.f32.mrb[0].mxu0
      %v782 = vadd.f32 %v671, %v781
      %v783 = vpop.f32.mrb[0].mxu0
      %v784 = vpop.f32.mrb[0].mxu0
      %v785 = vadd.f32 %v674, %v784
      %v786 = vpop.f32.mrb[0].mxu0
      %787 = vmatprep.mubr.bf16.mxu0 0
      %788 = vmatmul.mubr.bf16.gmra.mrb[0].mxu0 %v610
      %v789 = vpop.f32.mrb[0].mxu0
      %v790 = vadd.f32 %v679, %v789
      %v791 = vpop.f32.mrb[0].mxu0
      %v792 = vpop.f32.mrb[0].mxu0
      %v793 = vadd.f32 %v682, %v792
      %v794 = vpop.f32.mrb[0].mxu0
      %795 = vmatprep.mubr.bf16.mxu0 0
      %796 = vmatmul.mubr.bf16.gmra.mrb[0].mxu0 %v612
      %v797 = vpop.f32.mrb[0].mxu0
      %v798 = vadd.f32 %v687, %v797
      %v799 = vpop.f32.mrb[0].mxu0
      %v800 = vpop.f32.mrb[0].mxu0
      %v801 = vadd.f32 %v690, %v800
      %v802 = vpop.f32.mrb[0].mxu0
      %803 = vmatprep.mubr.bf16.mxu0 0
      %804 = vmatmul.mubr.bf16.gmra.mrb[0].mxu0 %v614
      %v805 = vpop.f32.mrb[0].mxu0
      %v806 = vadd.f32 %v695, %v805
      %v807 = vpop.f32.mrb[0].mxu0
      %v808 = vpop.f32.mrb[0].mxu0
      %v809 = vadd.f32 %v698, %v808
      %v810 = vpop.f32.mrb[0].mxu0
      %811 = vmatprep.mubr.bf16.mxu0 0
      %812 = vmatmul.mubr.bf16.gmra.mrb[0].mxu0 %v616
      %v813 = vpop.f32.mrb[0].mxu0
      %v814 = vadd.f32 %v703, %v813
      %v815 = vpop.f32.mrb[0].mxu0
      %v816 = vpop.f32.mrb[0].mxu0
      %v817 = vadd.f32 %v706, %v816
      %v818 = vpop.f32.mrb[0].mxu0
      %819 = vmatprep.mubr.bf16.mxu0 0
      %820 = vmatmul.mubr.bf16.gmra.mrb[0].mxu0 %v618
      %v821 = vpop.f32.mrb[0].mxu0
      %v822 = vadd.f32 %v711, %v821
      %v823 = vpop.f32.mrb[0].mxu0
      %v824 = vpop.f32.mrb[0].mxu0
      %v825 = vadd.f32 %v714, %v824
      %v826 = vpop.f32.mrb[0].mxu0
      %827 = vmatprep.mubr.bf16.mxu0 0
      %828 = vmatmul.mubr.bf16.gmra.mrb[0].mxu0 %v620
      %v829 = vpop.f32.mrb[0].mxu0
      %v830 = vadd.f32 %v719, %v829
      %v831 = vpop.f32.mrb[0].mxu0
      %v832 = vpop.f32.mrb[0].mxu0
      %v833 = vadd.f32 %v722, %v832
      %v834 = vpop.f32.mrb[0].mxu0
      %835 = vdwg.mxu0
      %s836 = scalar_lea.vmem %s224, 24
      %v837 = vld [vmem:[%s836] sm:$0xf]
      %v838 = vld [vmem:[%s836 + $0x4] sm:$0xf]
      %v839 = vld [vmem:[%s836 + $0x8] sm:$0xf]
      %v843 = vunpack.c.l.b16 %v837
      %v844 = vunpack.c.l.b16 %v838
      %v845 = vunpack.c.l.b16 %v839
      %v846 = vpack.c.b16 %v844, %v843
      %v847 = vpack.c.b16 %v845, %v845
      %v849 = vsel %vm607, %v590, 0
      %v852 = vsel %vm624, %v847, 0
      %854 = vmatprep.subr.bf16.mxu0 0
      %855 = vmatpush1.bf16.msra.mxu0 %v846
      %856 = vmatprep.subr.bf16.mxu0 0
      %857 = vmatpush1.bf16.msra.mxu0 %v852
      %858 = vmatprep.subr.bf16.mxu0 0
      %859 = vmatpush1.bf16.msra.mxu0 0
      %860 = vmatprep.subr.bf16.mxu0 0
      %861 = vmatpush1.bf16.msra.mxu0 0
      %862 = vmatprep.subr.bf16.mxu0 0
      %863 = vmatpush1.bf16.msra.mxu0 0
      %864 = vmatprep.subr.bf16.mxu0 0
      %865 = vmatpush1.bf16.msra.mxu0 0
      %866 = vmatprep.subr.bf16.mxu0 0
      %867 = vmatpush1.bf16.msra.mxu0 0
      %868 = vmatprep.subr.bf16.mxu0 0
      %869 = vmatpush1.bf16.msra.mxu0 0
      %870 = vmatprep.subr.bf16.mxu0 0
      %871 = vmatpush1.bf16.msra.mxu0 0
      %872 = vmatprep.subr.bf16.mxu0 0
      %873 = vmatpush1.bf16.msra.mxu0 0
      %874 = vmatprep.subr.bf16.mxu0 0
      %875 = vmatpush1.bf16.msra.mxu0 0
      %876 = vmatprep.subr.bf16.mxu0 0
      %877 = vmatpush1.bf16.msra.mxu0 0
      %878 = vmatprep.subr.bf16.mxu0 0
      %879 = vmatpush1.bf16.msra.mxu0 0
      %880 = vmatprep.subr.bf16.mxu0 0
      %881 = vmatpush1.bf16.msra.mxu0 0
      %882 = vmatprep.subr.bf16.mxu0 0
      %883 = vmatpush1.bf16.msra.mxu0 0
      %884 = vmatprep.subr.bf16.mxu0 0
      %885 = vmatpush1.bf16.msra.mxu0 0
      %886 = vmatprep.mubr.bf16.mxu0 0
      %887 = vmatmul.mubr.bf16.gmra.mrb[0].mxu0 %v610
      %v888 = vpop.f32.mrb[0].mxu0
      %v889 = vadd.f32 0.0, %v888
      %v890 = vpop.f32.mrb[0].mxu0
      %v891 = vpop.f32.mrb[0].mxu0
      %v892 = vadd.f32 0.0, %v891
      %v893 = vpop.f32.mrb[0].mxu0
      %894 = vmatprep.mubr.bf16.mxu0 0
      %895 = vmatmul.mubr.bf16.gmra.mrb[0].mxu0 %v612
      %v896 = vpop.f32.mrb[0].mxu0
      %v897 = vadd.f32 0.0, %v896
      %v898 = vpop.f32.mrb[0].mxu0
      %v899 = vpop.f32.mrb[0].mxu0
      %v900 = vadd.f32 0.0, %v899
      %v901 = vpop.f32.mrb[0].mxu0
      %902 = vmatprep.mubr.bf16.mxu0 0
      %903 = vmatmul.mubr.bf16.gmra.mrb[0].mxu0 %v614
      %v904 = vpop.f32.mrb[0].mxu0
      %v905 = vadd.f32 0.0, %v904
      %v906 = vpop.f32.mrb[0].mxu0
      %v907 = vpop.f32.mrb[0].mxu0
      %v908 = vadd.f32 0.0, %v907
      %v909 = vpop.f32.mrb[0].mxu0
      %910 = vmatprep.mubr.bf16.mxu0 0
      %911 = vmatmul.mubr.bf16.gmra.mrb[0].mxu0 %v616
      %v912 = vpop.f32.mrb[0].mxu0
      %v913 = vadd.f32 0.0, %v912
      %v914 = vpop.f32.mrb[0].mxu0
      %v915 = vpop.f32.mrb[0].mxu0
      %v916 = vadd.f32 0.0, %v915
      %v917 = vpop.f32.mrb[0].mxu0
      %918 = vmatprep.mubr.bf16.mxu0 0
      %919 = vmatmul.mubr.bf16.gmra.mrb[0].mxu0 %v618
      %v920 = vpop.f32.mrb[0].mxu0
      %v921 = vadd.f32 0.0, %v920
      %v922 = vpop.f32.mrb[0].mxu0
      %v923 = vpop.f32.mrb[0].mxu0
      %v924 = vadd.f32 0.0, %v923
      %v925 = vpop.f32.mrb[0].mxu0
      %926 = vmatprep.mubr.bf16.mxu0 0
      %927 = vmatmul.mubr.bf16.gmra.mrb[0].mxu0 %v620
      %v928 = vpop.f32.mrb[0].mxu0
      %v929 = vadd.f32 0.0, %v928
      %v930 = vpop.f32.mrb[0].mxu0
      %v931 = vpop.f32.mrb[0].mxu0
      %v932 = vadd.f32 0.0, %v931
      %v933 = vpop.f32.mrb[0].mxu0
      %934 = vmatprep.mubr.bf16.mxu0 0
      %935 = vmatmul.mubr.bf16.gmra.mrb[0].mxu0 %v622
      %v936 = vpop.f32.mrb[0].mxu0
      %v937 = vadd.f32 0.0, %v936
      %v938 = vpop.f32.mrb[0].mxu0
      %v939 = vpop.f32.mrb[0].mxu0
      %v940 = vadd.f32 0.0, %v939
      %v941 = vpop.f32.mrb[0].mxu0
      %942 = vmatprep.mubr.bf16.mxu0 0
      %943 = vmatmul.mubr.bf16.gmra.mrb[0].mxu0 %v849
      %v944 = vpop.f32.mrb[0].mxu0
      %v945 = vadd.f32 0.0, %v944
      %v946 = vpop.f32.mrb[0].mxu0
      %v947 = vpop.f32.mrb[0].mxu0
      %v948 = vadd.f32 0.0, %v947
      %v949 = vpop.f32.mrb[0].mxu0
      %950 = vdwg.mxu0
      %v951 = vadd.f32 %v774, %v889
      %v952 = vadd.f32 %v777, %v892
      %v953 = vadd.f32 %v782, %v897
      %v954 = vadd.f32 %v785, %v900
      %v955 = vadd.f32 %v790, %v905
      %v956 = vadd.f32 %v793, %v908
      %v957 = vadd.f32 %v798, %v913
      %v958 = vadd.f32 %v801, %v916
      %v959 = vadd.f32 %v806, %v921
      %v960 = vadd.f32 %v809, %v924
      %v961 = vadd.f32 %v814, %v929
      %v962 = vadd.f32 %v817, %v932
      %v963 = vadd.f32 %v822, %v937
      %v964 = vadd.f32 %v825, %v940
      %v965 = vadd.f32 %v830, %v945
      %v966 = vadd.f32 %v833, %v948
      %v967 = vld [vmem:[%s227] sm:$0x1]
      %v969 = vlaneseq
      %v970 = vshrl.u32 %v969, 7
      %v971 = vsub.s32 0, %v970
      %v972 = vrot.slane %v967, %v971
      %v974 = vadd.f32 %v951, %v972
      %v975 = vadd.f32 %v952, %v972
      %v976 = vadd.f32 %v953, %v972
      %v977 = vadd.f32 %v954, %v972
      %v978 = vadd.f32 %v955, %v972
      %v979 = vadd.f32 %v956, %v972
      %v980 = vadd.f32 %v957, %v972
      %v981 = vadd.f32 %v958, %v972
      %v982 = vadd.f32 %v959, %v972
      %v983 = vadd.f32 %v960, %v972
      %v984 = vadd.f32 %v961, %v972
      %v985 = vadd.f32 %v962, %v972
      %v986 = vadd.f32 %v963, %v972
      %v987 = vadd.f32 %v964, %v972
      %v988 = vadd.f32 %v965, %v972
      %v989 = vadd.f32 %v966, %v972
      %v990 = vsub.f32 0.0, %v974
      %v991 = vsub.f32 0.0, %v975
      %v992 = vsub.f32 0.0, %v976
      %v993 = vsub.f32 0.0, %v977
      %v994 = vsub.f32 0.0, %v978
      %v995 = vsub.f32 0.0, %v979
      %v996 = vsub.f32 0.0, %v980
      %v997 = vsub.f32 0.0, %v981
      %v998 = vsub.f32 0.0, %v982
      %v999 = vsub.f32 0.0, %v983
      %v1000 = vsub.f32 0.0, %v984
      %v1001 = vsub.f32 0.0, %v985
      %v1002 = vsub.f32 0.0, %v986
      %v1003 = vsub.f32 0.0, %v987
      %v1004 = vsub.f32 0.0, %v988
      %v1005 = vsub.f32 0.0, %v989
      %v1006 = vmul.f32 %v990, 1.442695
      %v1007 = vpow.pop %v1006
      %v1008 = vmul.f32 %v991, 1.442695
      %v1009 = vpow.pop %v1008
      %v1010 = vmul.f32 %v992, 1.442695
      %v1011 = vpow.pop %v1010
      %v1012 = vmul.f32 %v993, 1.442695
      %v1013 = vpow.pop %v1012
      %v1014 = vmul.f32 %v994, 1.442695
      %v1015 = vpow.pop %v1014
      %v1016 = vmul.f32 %v995, 1.442695
      %v1017 = vpow.pop %v1016
      %v1018 = vmul.f32 %v996, 1.442695
      %v1019 = vpow.pop %v1018
      %v1020 = vmul.f32 %v997, 1.442695
      %v1021 = vpow.pop %v1020
      %v1022 = vmul.f32 %v998, 1.442695
      %v1023 = vpow.pop %v1022
      %v1024 = vmul.f32 %v999, 1.442695
      %v1025 = vpow.pop %v1024
      %v1026 = vmul.f32 %v1000, 1.442695
      %v1027 = vpow.pop %v1026
      %v1028 = vmul.f32 %v1001, 1.442695
      %v1029 = vpow.pop %v1028
      %v1030 = vmul.f32 %v1002, 1.442695
      %v1031 = vpow.pop %v1030
      %v1032 = vmul.f32 %v1003, 1.442695
      %v1033 = vpow.pop %v1032
      %v1034 = vmul.f32 %v1004, 1.442695
      %v1035 = vpow.pop %v1034
      %v1036 = vmul.f32 %v1005, 1.442695
      %v1037 = vpow.pop %v1036
      %v1038 = vadd.f32 %v1007, 1.0
      %v1039 = vadd.f32 %v1009, 1.0
      %v1040 = vadd.f32 %v1011, 1.0
      %v1041 = vadd.f32 %v1013, 1.0
      %v1042 = vadd.f32 %v1015, 1.0
      %v1043 = vadd.f32 %v1017, 1.0
      %v1044 = vadd.f32 %v1019, 1.0
      %v1045 = vadd.f32 %v1021, 1.0
      %v1046 = vadd.f32 %v1023, 1.0
      %v1047 = vadd.f32 %v1025, 1.0
      %v1048 = vadd.f32 %v1027, 1.0
      %v1049 = vadd.f32 %v1029, 1.0
      %v1050 = vadd.f32 %v1031, 1.0
      %v1051 = vadd.f32 %v1033, 1.0
      %v1052 = vadd.f32 %v1035, 1.0
      %v1053 = vadd.f32 %v1037, 1.0
      %v1054 = vrcp.pop %v1038
      %v1055 = vmul.f32 1.0, %v1054
      %v1056 = vrcp.pop %v1039
      %v1057 = vmul.f32 1.0, %v1056
      %v1058 = vrcp.pop %v1040
      %v1059 = vmul.f32 1.0, %v1058
      %v1060 = vrcp.pop %v1041
      %v1061 = vmul.f32 1.0, %v1060
      %v1062 = vrcp.pop %v1042
      %v1063 = vmul.f32 1.0, %v1062
      %v1064 = vrcp.pop %v1043
      %v1065 = vmul.f32 1.0, %v1064
      %v1066 = vrcp.pop %v1044
      %v1067 = vmul.f32 1.0, %v1066
      %v1068 = vrcp.pop %v1045
      %v1069 = vmul.f32 1.0, %v1068
      %v1070 = vrcp.pop %v1046
      %v1071 = vmul.f32 1.0, %v1070
      %v1072 = vrcp.pop %v1047
      %v1073 = vmul.f32 1.0, %v1072
      %v1074 = vrcp.pop %v1048
      %v1075 = vmul.f32 1.0, %v1074
      %v1076 = vrcp.pop %v1049
      %v1077 = vmul.f32 1.0, %v1076
      %v1078 = vrcp.pop %v1050
      %v1079 = vmul.f32 1.0, %v1078
      %v1080 = vrcp.pop %v1051
      %v1081 = vmul.f32 1.0, %v1080
      %v1082 = vrcp.pop %v1052
      %v1083 = vmul.f32 1.0, %v1082
      %v1084 = vrcp.pop %v1053
      %v1085 = vmul.f32 1.0, %v1084
      %v1086 = vmul.f32 %v974, %v1055
      %v1087 = vmul.f32 %v975, %v1057
      %v1088 = vmul.f32 %v976, %v1059
      %v1089 = vmul.f32 %v977, %v1061
      %v1090 = vmul.f32 %v978, %v1063
      %v1091 = vmul.f32 %v979, %v1065
      %v1092 = vmul.f32 %v980, %v1067
      %v1093 = vmul.f32 %v981, %v1069
      %v1094 = vmul.f32 %v982, %v1071
      %v1095 = vmul.f32 %v983, %v1073
      %v1096 = vmul.f32 %v984, %v1075
      %v1097 = vmul.f32 %v985, %v1077
      %v1098 = vmul.f32 %v986, %v1079
      %v1099 = vmul.f32 %v987, %v1081
      %v1100 = vmul.f32 %v988, %v1083
      %v1101 = vmul.f32 %v989, %v1085
      %1102 = vst [vmem:[%s240] sm:$0xff] %v1086
      %1103 = vst [vmem:[%s240 + $0x8] sm:$0xff] %v1087
      %1104 = vst [vmem:[%s240 + $0x10] sm:$0xff] %v1088
      %1105 = vst [vmem:[%s240 + $0x18] sm:$0xff] %v1089
      %1106 = vst [vmem:[%s240 + $0x20] sm:$0xff] %v1090
      %1107 = vst [vmem:[%s240 + $0x28] sm:$0xff] %v1091
      %1108 = vst [vmem:[%s240 + $0x30] sm:$0xff] %v1092
      %1109 = vst [vmem:[%s240 + $0x38] sm:$0xff] %v1093
      %1110 = vst [vmem:[%s240 + $0x40] sm:$0xff] %v1094
      %1111 = vst [vmem:[%s240 + $0x48] sm:$0xff] %v1095
      %1112 = vst [vmem:[%s240 + $0x50] sm:$0xff] %v1096
      %1113 = vst [vmem:[%s240 + $0x58] sm:$0xff] %v1097
      %1114 = vst [vmem:[%s240 + $0x60] sm:$0xff] %v1098
      %1115 = vst [vmem:[%s240 + $0x68] sm:$0xff] %v1099
      %1116 = vst [vmem:[%s240 + $0x70] sm:$0xff] %v1100
      %1117 = vst [vmem:[%s240 + $0x78] sm:$0xff] %v1101
      %s1118 = smul.u32 8, %s20
      %p1119 = scmp.lt.s32.totalorder %s19, 1
      %s1120 = scalar_select %p1119, %s19, 1
      %p1121 = scmp.lt.s32.totalorder %s1118, 15
      %s1122 = scalar_select %p1121, %s1118, 15
      %p1123 = scmp.lt.s32.totalorder %s21, 0
      %s1124 = scalar_select %p1123, %s21, 0
      %s1125 = smul.addr %s1122, 2
      %s1126 = sadd.s32 %s1124, %s1125
      %s1127 = smul.addr %s1120, 32
      %s1128 = sadd.s32 %s1126, %s1127
      %s1129 = smul.addr %s1128, 8
      %s1130 = scalar_lea.vmem %s3, %s1129
      // Predicated region
      $region33: #{repvgg_fused_forward.1} parent=31 // pred_check
        %p1131 = pneg %p133
      $region34: #{repvgg_fused_forward.1} parent=31 // pred_check_branch
        %1133 = sbr.rel (%p1131) target = $region36
      $region35: #{repvgg_fused_forward.1} parent=31 // pred_region
        %s1134 = smul.u32 8, %s20
      $region36: #{repvgg_fused_forward.1} parent=31 // pred_fallthru
        _
    $region32: #{repvgg_fused_forward.1} parent=5 // pred_fallthru
      _
    %p1135 = scmp.le.s32.totalorder 2, %s9
    // Predicated region
    $region37: #{repvgg_fused_forward.1} parent=5 // pred_check
      %p1136 = pneg %p1135
    $region38: #{repvgg_fused_forward.1} parent=5 // pred_check_branch
      %1138 = sbr.rel (%p1136) target = $region40
    $region39: #{repvgg_fused_forward.1} parent=5 // pred_region
      %s1139 = ssub.s32 %s9, 2
      // Predicated region
      $region41: #{repvgg_fused_forward.1} parent=39 // pred_check
        %p1140 = pneg %p139
      $region42: #{repvgg_fused_forward.1} parent=39 // pred_check_branch
        %1142 = sbr.rel (%p1140) target = $region44
      $region43: #{repvgg_fused_forward.1} parent=39 // pred_region
        %s1143 = smul.u32 8, %s23
        %p1144 = scmp.lt.s32.totalorder %s22, 1
        %s1145 = scalar_select %p1144, %s22, 1
        %p1146 = scmp.lt.s32.totalorder %s1143, 15
        %s1147 = scalar_select %p1146, %s1143, 15
        %p1148 = scmp.lt.s32.totalorder %s24, 0
        %s1149 = scalar_select %p1148, %s24, 0
        %s1150 = smul.addr %s1147, 2
        %s1151 = sadd.s32 %s1149, %s1150
        %s1152 = smul.addr %s1145, 32
        %s1153 = sadd.s32 %s1151, %s1152
        %s1154 = smul.addr %s1153, 8
        %s1155 = scalar_lea.vmem %s3, %s1154
      $region44: #{repvgg_fused_forward.1} parent=39 // pred_fallthru
        _
    $region40: #{repvgg_fused_forward.1} parent=5 // pred_fallthru
      _
  $region6: #{repvgg_fused_forward.1} parent=0 // loop_footer
    %s13 = sadd.s32 1, %s9
  $region7: #{repvgg_fused_forward.1} parent=0 // loop_footer_branch
    %8 = sbr.rel target = $region3
  $region8: #{repvgg_fused_forward.1} parent=0 // loop_exit
    _

</llo_original>
